<compile_context>
chip_gen: v5e
topology: v5e:2x2
jax: 0.10.0
libtpu: 0.0.40
codegen_flags: <defaults>
</compile_context>

<pallas_src>
import math

import jax
import jax.numpy as jnp
from jax.experimental import pallas as pl
from jax.experimental.pallas import tpu as pltpu


def _round_up(x, m):
    return ((x + m - 1) // m) * m


def _matmul_kernel(a_ref, b_ref, o_ref, acc_ref):
    # k == 0: zero the resident accumulator tile.
    @pl.when(pl.program_id(2) == 0)
    def _():
        acc_ref[...] = jnp.zeros_like(acc_ref)

    acc_ref[...] += jnp.dot(a_ref[...], b_ref[...],
                            preferred_element_type=jnp.float32)

    # k == last: single lane-dense store of the output tile.
    @pl.when(pl.program_id(2) == pl.num_programs(2) - 1)
    def _():
        o_ref[...] = acc_ref[...].astype(o_ref.dtype)


def _matmul_bias_kernel(a_ref, b_ref, bias_ref, o_ref, acc_ref):
    @pl.when(pl.program_id(2) == 0)
    def _():
        acc_ref[...] = jnp.zeros_like(acc_ref)

    acc_ref[...] += jnp.dot(a_ref[...], b_ref[...],
                            preferred_element_type=jnp.float32)

    # Bias is applied only in the finalize branch (once per output tile),
    # keeping the VPU slot free during the MXU-bound accumulation.
    @pl.when(pl.program_id(2) == pl.num_programs(2) - 1)
    def _():
        o_ref[...] = (acc_ref[...]
                      + bias_ref[...].astype(jnp.float32)).astype(o_ref.dtype)


def _tiled_matmul(a, b, bias=None, *, tm, tn, tk, out_dtype):
    """C = A @ B (+ bias), tiled over grid (M//tm, N//tn, K//tk).

    A: [M, K], B: [K, N], bias: optional [1, N].  All dims must already be
    padded to multiples of the corresponding tile sizes.
    """
    m, k = a.shape
    k2, n = b.shape
    assert k == k2
    assert m % tm == 0 and n % tn == 0 and k % tk == 0

    grid = (m // tm, n // tn, k // tk)

    a_spec = pl.BlockSpec((tm, tk), lambda i, j, kk: (i, kk))
    b_spec = pl.BlockSpec((tk, tn), lambda i, j, kk: (kk, j))
    o_spec = pl.BlockSpec((tm, tn), lambda i, j, kk: (i, j))

    itemsize = jnp.dtype(a.dtype).itemsize
    bytes_accessed = itemsize * (m * k + k * n) + jnp.dtype(out_dtype).itemsize * m * n
    if bias is not None:
        bytes_accessed += 4 * n
    cost = pl.CostEstimate(flops=2 * m * n * k, transcendentals=0,
                           bytes_accessed=int(bytes_accessed))

    compiler_params = pltpu.CompilerParams(
        dimension_semantics=("parallel", "parallel", "arbitrary"))

    if bias is None:
        return pl.pallas_call(
            _matmul_kernel,
            out_shape=jax.ShapeDtypeStruct((m, n), out_dtype),
            grid_spec=pltpu.PrefetchScalarGridSpec(
                num_scalar_prefetch=0,
                grid=grid,
                in_specs=[a_spec, b_spec],
                out_specs=o_spec,
                scratch_shapes=[pltpu.VMEM((tm, tn), jnp.float32)]),
            compiler_params=compiler_params,
            cost_estimate=cost,
        )(a, b)
    else:
        bias_spec = pl.BlockSpec((1, tn), lambda i, j, kk: (0, j))
        return pl.pallas_call(
            _matmul_bias_kernel,
            out_shape=jax.ShapeDtypeStruct((m, n), out_dtype),
            grid_spec=pltpu.PrefetchScalarGridSpec(
                num_scalar_prefetch=0,
                grid=grid,
                in_specs=[a_spec, b_spec, bias_spec],
                out_specs=o_spec,
                scratch_shapes=[pltpu.VMEM((tm, tn), jnp.float32)]),
            compiler_params=compiler_params,
            cost_estimate=cost,
        )(a, b, bias)


def graph_convolution(x, adj, weight, bias=None, *,
                      compute_dtype=None,
                      tile_rows=256, tile_fin=512, tile_fout=256):
    """Pallas implementation of GraphConvolution.forward.

    x:      [N, F_in]      adj: [N, N]
    weight: [F_in, F_out]  bias: optional [F_out]
    returns [N, F_out] in x's original dtype.

    compute_dtype=jnp.bfloat16 is recommended on v6e/v7x (f32 accumulation
    is kept inside the kernels); default keeps the input precision.
    """
    orig_dtype = x.dtype
    n, f_in = x.shape
    f_out = weight.shape[1]

    if compute_dtype is not None:
        x = x.astype(compute_dtype)
        adj = adj.astype(compute_dtype)
        weight = weight.astype(compute_dtype)

    # Tile sizes: lane (last) dims multiples of 128, capped by the target.
    t_rows = min(tile_rows, _round_up(n, 128))      # rows of adj/output, and
                                                    # the N-reduction tile
    t_fin = min(tile_fin, _round_up(f_in, 128))     # F_in reduction tile
    t_fout = min(tile_fout, _round_up(f_out, 128))  # F_out (lane) tile

    n_p = _round_up(n, t_rows)
    fin_p = _round_up(f_in, t_fin)
    fout_p = _round_up(f_out, t_fout)

    # Zero-pad to tile multiples; zeros contribute nothing to the reductions,
    # result is cropped at the end.
    x_p = jnp.zeros((n_p, fin_p), x.dtype).at[:n, :f_in].set(x)
    adj_p = jnp.zeros((n_p, n_p), adj.dtype).at[:n, :n].set(adj)
    w_p = jnp.zeros((fin_p, fout_p), weight.dtype).at[:f_in, :f_out].set(weight)

    # Phase 1: support = X @ W   (reduction over F_in)
    support = _tiled_matmul(x_p, w_p, tm=t_rows, tn=t_fout, tk=t_fin,
                            out_dtype=x.dtype)

    # Phase 2: output = adj @ support (+ bias)   (reduction over N)
    bias_p = None
    if bias is not None:
        bias_p = jnp.zeros((1, fout_p), jnp.float32).at[0, :f_out].set(
            bias.astype(jnp.float32))
    out_p = _tiled_matmul(adj_p, support, bias_p,
                          tm=t_rows, tn=t_fout, tk=t_rows,
                          out_dtype=orig_dtype)

    return out_p[:n, :f_out]


def init_gcn_params(key, in_features, out_features, bias=False):
    """Deterministic init matching reset_parameters(): uniform(-stdv, stdv)."""
    stdv = 1.0 / math.sqrt(out_features)
    kw, kb = jax.random.split(key)
    weight = jax.random.uniform(
        kw, (in_features, out_features), dtype=jnp.float32,
        minval=-stdv, maxval=stdv)
    b = None
    if bias:
        b = jax.random.uniform(
            kb, (out_features,), dtype=jnp.float32, minval=-stdv, maxval=stdv)
    return weight, b


if __name__ == "__main__":
    key = jax.random.PRNGKey(0)
    k_x, k_adj, k_p = jax.random.split(key, 3)

    N = 8            # number of graph nodes
    F_IN = 32        # in_features
    F_OUT = 64       # out_features

    x = jax.random.normal(k_x, (N, F_IN), dtype=jnp.float32)
    # symmetric row-normalized-ish adjacency (dense), deterministic
    a = jax.random.uniform(k_adj, (N, N), dtype=jnp.float32)
    adj = (a + a.T) * 0.5
    adj = adj / jnp.sum(adj, axis=-1, keepdims=True)

    # --- bias=False path (default of the PyTorch module) ---
    weight, bias = init_gcn_params(k_p, F_IN, F_OUT, bias=False)
    out = graph_convolution(x, adj, weight, bias)
    out = jax.block_until_ready(out)
    ref = adj @ (x @ weight)
    assert out.shape == (N, F_OUT)
    assert jnp.allclose(out, ref, atol=1e-5, rtol=1e-5)

    # --- bias=True path ---
    weight_b, bias_b = init_gcn_params(k_p, F_IN, F_OUT, bias=True)
    out_b = graph_convolution(x, adj, weight_b, bias_b)
    out_b = jax.block_until_ready(out_b)
    ref_b = adj @ (x @ weight_b) + bias_b
    assert out_b.shape == (N, F_OUT)
    assert jnp.allclose(out_b, ref_b, atol=1e-5, rtol=1e-5)

    print("KERNEL_OK")
</pallas_src>

<mosaic_0001>
module attributes {stable_mosaic.version = 11 : i64} {
  func.func @_matmul_kernel(%arg0: i32, %arg1: i32, %arg2: i32, %arg3: memref<128x128xf32, #tpu.memory_space<vmem>>, %arg4: memref<128x128xf32, #tpu.memory_space<vmem>>, %arg5: memref<128x128xf32, #tpu.memory_space<vmem>>, %arg6: memref<128x128xf32, #tpu.memory_space<vmem>>) attributes {dimension_semantics = [#tpu.dimension_semantics<parallel>, #tpu.dimension_semantics<parallel>, #tpu.dimension_semantics<arbitrary>], iteration_bounds = array<i64: 1, 1, 1>, scalar_prefetch = 0 : i64, scratch_operands = 1 : i64, tpu.core_type = #tpu.core_type<tc>, window_params = [{transform_indices = @transform_0, window_bounds = array<i64: 128, 128>}, {transform_indices = @transform_1, window_bounds = array<i64: 128, 128>}, {transform_indices = @transform_2, window_bounds = array<i64: 128, 128>}]} {
    %c0_i32 = arith.constant 0 : i32
    %0 = arith.cmpi eq, %arg2, %c0_i32 : i32
    %1 = arith.extui %0 : i1 to i32
    %c0_i32_0 = arith.constant 0 : i32
    %2 = arith.cmpi ne, %1, %c0_i32_0 : i32
    scf.if %2 {
      %cst_10 = arith.constant 0.000000e+00 : f32
      %12 = vector.broadcast %cst_10 : f32 to vector<128x128xf32>
      %c0_11 = arith.constant 0 : index
      %c0_12 = arith.constant 0 : index
      %13 = vector.load %arg6[%c0_11, %c0_12] : memref<128x128xf32, #tpu.memory_space<vmem>>, vector<128x128xf32>
      tpu.vector_store %arg6[%c0_11, %c0_12], %12 {strides = array<i32>} : memref<128x128xf32, #tpu.memory_space<vmem>>, vector<128x128xf32>,
    } else {
    }
    %c0 = arith.constant 0 : index
    %c0_1 = arith.constant 0 : index
    %3 = vector.load %arg6[%c0, %c0_1] : memref<128x128xf32, #tpu.memory_space<vmem>>, vector<128x128xf32>
    %c0_2 = arith.constant 0 : index
    %c0_3 = arith.constant 0 : index
    %4 = vector.load %arg3[%c0_2, %c0_3] : memref<128x128xf32, #tpu.memory_space<vmem>>, vector<128x128xf32>
    %c0_4 = arith.constant 0 : index
    %c0_5 = arith.constant 0 : index
    %5 = vector.load %arg4[%c0_4, %c0_5] : memref<128x128xf32, #tpu.memory_space<vmem>>, vector<128x128xf32>
    %cst = arith.constant dense<0.000000e+00> : vector<128x128xf32>
    %6 = tpu.matmul %4, %5, %cst {dimension_numbers = #tpu.dot_dimension_numbers<[1], [0], [0], [1], [0, 0, 1, 1], [], []>} : vector<128x128xf32>, vector<128x128xf32>, vector<128x128xf32> -> vector<128x128xf32>
    %7 = arith.addf %3, %6 : vector<128x128xf32>
    %c0_6 = arith.constant 0 : index
    %c0_7 = arith.constant 0 : index
    %8 = vector.load %arg6[%c0_6, %c0_7] : memref<128x128xf32, #tpu.memory_space<vmem>>, vector<128x128xf32>
    tpu.vector_store %arg6[%c0_6, %c0_7], %7 {strides = array<i32>} : memref<128x128xf32, #tpu.memory_space<vmem>>, vector<128x128xf32>,
    %c0_i32_8 = arith.constant 0 : i32
    %9 = arith.cmpi eq, %arg2, %c0_i32_8 : i32
    %10 = arith.extui %9 : i1 to i32
    %c0_i32_9 = arith.constant 0 : i32
    %11 = arith.cmpi ne, %10, %c0_i32_9 : i32
    scf.if %11 {
      %c0_10 = arith.constant 0 : index
      %c0_11 = arith.constant 0 : index
      %12 = vector.load %arg6[%c0_10, %c0_11] : memref<128x128xf32, #tpu.memory_space<vmem>>, vector<128x128xf32>
      %c0_12 = arith.constant 0 : index
      %c0_13 = arith.constant 0 : index
      %13 = vector.load %arg5[%c0_12, %c0_13] : memref<128x128xf32, #tpu.memory_space<vmem>>, vector<128x128xf32>
      tpu.vector_store %arg5[%c0_12, %c0_13], %12 {strides = array<i32>} : memref<128x128xf32, #tpu.memory_space<vmem>>, vector<128x128xf32>,
    } else {
    }
    return
  }
  func.func @transform_0(%arg0: i32, %arg1: i32, %arg2: i32) -> (i32, i32) {
    %c0_i32 = arith.constant 0 : i32
    return %arg0, %arg2 : i32, i32
  }
  func.func @transform_1(%arg0: i32, %arg1: i32, %arg2: i32) -> (i32, i32) {
    %c0_i32 = arith.constant 0 : i32
    return %arg2, %arg1 : i32, i32
  }
  func.func @transform_2(%arg0: i32, %arg1: i32, %arg2: i32) -> (i32, i32) {
    %c0_i32 = arith.constant 0 : i32
    return %arg0, %arg1 : i32, i32
  }
}

</mosaic_0001>

<llo_original>
// kernel: tpu_custom_call.1
$region0: #{tpu_custom_call.1}
  #allocation0 [shape = 'u32[]', space=smem, size = 0x4, offset = 0x4, fixed_abs, tag = 'smem constant byte address 0x4 - core index']
  #allocation1 [shape = 'u32[72,128]{1,0:T(1,128)}', space=vmem, size = 0x9000, scoped, tag = 'internal scratch']
  #allocation2 [shape = 'f32[128,128]{1,0:T(8,128)}', space=vmem, size = 0x10000, scoped, tag = 'scratch operand']
  %s0 = inlined_call_operand.hbm [shape: f32[128,128], index: 0, kind: input, shape index: {}]
  %s1 = inlined_call_operand.hbm [shape: f32[128,128], index: 1, kind: input, shape index: {}]
  %s2 = inlined_call_operand.hbm [shape: f32[128,128], index: 2, kind: output, shape index: {}]
  %s3 = sld [smem:[#allocation0]]
  $region34: #{tpu_custom_call.1} parent=0
    _
  %s5 = ssub.s32 1, %s3
  %s6 = scalar_select 0, %s5, %s3
  $region1: #{tpu_custom_call.1} parent=0
    #allocation3 [shape = 'u8[65536]{0}', space=vmem, size = 0x10000, scoped, tag = 'input window, operand 0, single buffered']
    #allocation4 [shape = 's32[1]{0}', space=sflag, size = 0x4, scoped, tag = 'scoped memory for tpu_custom_call.1']
    #allocation5 [shape = 's32[1]{0}', space=sflag, size = 0x4, scoped, tag = 'scoped memory for tpu_custom_call.1']
    #allocation6 [shape = 'u8[65536]{0}', space=vmem, size = 0x10000, scoped, tag = 'input window, operand 1, single buffered']
    #allocation7 [shape = 's32[1]{0}', space=sflag, size = 0x4, scoped, tag = 'scoped memory for tpu_custom_call.1']
    #allocation8 [shape = 'u8[65536]{0}', space=vmem, size = 0x10000, scoped, tag = 'output window, operand 0, single buffered']
    %7 = vsyncpa [#allocation4], 0
    %8 = vsyncpa [#allocation7], 0
    %9 = vsyncpa [#allocation5], 0
    // Predicated region
    $region2: #{tpu_custom_call.1} parent=1 // pred_check
      _
    $region3: #{tpu_custom_call.1} parent=1 // pred_check_branch
      %11 = sbr.rel (0) target = $region5
    $region4: #{tpu_custom_call.1} parent=1 // pred_region
      %13 = vsyncadd [#allocation4], 0
      %s14 = sshll.u32 %s0, 4
      %s15 = int_to_ptr.hbm [resolvable:$true] %s14
      %s16 = sshll.u32 [#allocation3], 4
      %s17 = int_to_ptr.vmem [resolvable:$true] %s16
      %22 = dma.hbm_to_vmem [thread:$0]  %s15, 2048, %s17, [#allocation4], 128, 128, 8
    $region5: #{tpu_custom_call.1} parent=1 // pred_fallthru
      _
    // Predicated region
    $region6: #{tpu_custom_call.1} parent=1 // pred_check
      _
    $region7: #{tpu_custom_call.1} parent=1 // pred_check_branch
      %24 = sbr.rel (0) target = $region9
    $region8: #{tpu_custom_call.1} parent=1 // pred_region
      %26 = vsyncadd [#allocation7], 0
      %s27 = sshll.u32 %s1, 4
      %s28 = int_to_ptr.hbm [resolvable:$true] %s27
      %s29 = sshll.u32 [#allocation6], 4
      %s30 = int_to_ptr.vmem [resolvable:$true] %s29
      %35 = dma.hbm_to_vmem [thread:$0]  %s28, 2048, %s30, [#allocation7], 128, 128, 8
    $region9: #{tpu_custom_call.1} parent=1 // pred_fallthru
      _
    // Predicated region
    $region10: #{tpu_custom_call.1} parent=1 // pred_check
      _
    $region11: #{tpu_custom_call.1} parent=1 // pred_check_branch
      %37 = sbr.rel (0) target = $region13
    $region12: #{tpu_custom_call.1} parent=1 // pred_region
      %39 = dma.done [#allocation4], 2048
    $region13: #{tpu_custom_call.1} parent=1 // pred_fallthru
      _
    // Predicated region
    $region14: #{tpu_custom_call.1} parent=1 // pred_check
      _
    $region15: #{tpu_custom_call.1} parent=1 // pred_check_branch
      %41 = sbr.rel (0) target = $region17
    $region16: #{tpu_custom_call.1} parent=1 // pred_region
      %43 = dma.done [#allocation7], 2048
    $region17: #{tpu_custom_call.1} parent=1 // pred_fallthru
      _
    %p44 = scmp.eq.s32.totalorder 0, 0
    // Predicated region
    $region18: #{tpu_custom_call.1} parent=1 // pred_check
      %p45 = pneg %p44
    $region19: #{tpu_custom_call.1} parent=1 // pred_check_branch
      %47 = sbr.rel (%p45) target = $region21
    $region20: #{tpu_custom_call.1} parent=1 // pred_region
      %48 = vst [vmem:[#allocation2] sm:$0xff] 0.0
      %49 = vst [vmem:[#allocation2 + $0x8] sm:$0xff] 0.0
      %50 = vst [vmem:[#allocation2 + $0x10] sm:$0xff] 0.0
      %51 = vst [vmem:[#allocation2 + $0x18] sm:$0xff] 0.0
      %52 = vst [vmem:[#allocation2 + $0x20] sm:$0xff] 0.0
      %53 = vst [vmem:[#allocation2 + $0x28] sm:$0xff] 0.0
      %54 = vst [vmem:[#allocation2 + $0x30] sm:$0xff] 0.0
      %55 = vst [vmem:[#allocation2 + $0x38] sm:$0xff] 0.0
      %56 = vst [vmem:[#allocation2 + $0x40] sm:$0xff] 0.0
      %57 = vst [vmem:[#allocation2 + $0x48] sm:$0xff] 0.0
      %58 = vst [vmem:[#allocation2 + $0x50] sm:$0xff] 0.0
      %59 = vst [vmem:[#allocation2 + $0x58] sm:$0xff] 0.0
      %60 = vst [vmem:[#allocation2 + $0x60] sm:$0xff] 0.0
      %61 = vst [vmem:[#allocation2 + $0x68] sm:$0xff] 0.0
      %62 = vst [vmem:[#allocation2 + $0x70] sm:$0xff] 0.0
      %63 = vst [vmem:[#allocation2 + $0x78] sm:$0xff] 0.0
    $region21: #{tpu_custom_call.1} parent=1 // pred_fallthru
      _
    %v64 = vld [vmem:[#allocation2] sm:$0xff]
    %v65 = vld [vmem:[#allocation2 + $0x8] sm:$0xff]
    %v66 = vld [vmem:[#allocation2 + $0x10] sm:$0xff]
    %v67 = vld [vmem:[#allocation2 + $0x18] sm:$0xff]
    %v68 = vld [vmem:[#allocation2 + $0x20] sm:$0xff]
    %v69 = vld [vmem:[#allocation2 + $0x28] sm:$0xff]
    %v70 = vld [vmem:[#allocation2 + $0x30] sm:$0xff]
    %v71 = vld [vmem:[#allocation2 + $0x38] sm:$0xff]
    %v72 = vld [vmem:[#allocation2 + $0x40] sm:$0xff]
    %v73 = vld [vmem:[#allocation2 + $0x48] sm:$0xff]
    %v74 = vld [vmem:[#allocation2 + $0x50] sm:$0xff]
    %v75 = vld [vmem:[#allocation2 + $0x58] sm:$0xff]
    %v76 = vld [vmem:[#allocation2 + $0x60] sm:$0xff]
    %v77 = vld [vmem:[#allocation2 + $0x68] sm:$0xff]
    %v78 = vld [vmem:[#allocation2 + $0x70] sm:$0xff]
    %v79 = vld [vmem:[#allocation2 + $0x78] sm:$0xff]
    %v80 = vld [vmem:[#allocation3] sm:$0xff]
    %v81 = vld [vmem:[#allocation3 + $0x8] sm:$0xff]
    %v82 = vld [vmem:[#allocation3 + $0x10] sm:$0xff]
    %v83 = vld [vmem:[#allocation3 + $0x18] sm:$0xff]
    %v84 = vld [vmem:[#allocation3 + $0x20] sm:$0xff]
    %v85 = vld [vmem:[#allocation3 + $0x28] sm:$0xff]
    %v86 = vld [vmem:[#allocation3 + $0x30] sm:$0xff]
    %v87 = vld [vmem:[#allocation3 + $0x38] sm:$0xff]
    %v88 = vld [vmem:[#allocation3 + $0x40] sm:$0xff]
    %v89 = vld [vmem:[#allocation3 + $0x48] sm:$0xff]
    %v90 = vld [vmem:[#allocation3 + $0x50] sm:$0xff]
    %v91 = vld [vmem:[#allocation3 + $0x58] sm:$0xff]
    %v92 = vld [vmem:[#allocation3 + $0x60] sm:$0xff]
    %v93 = vld [vmem:[#allocation3 + $0x68] sm:$0xff]
    %v94 = vld [vmem:[#allocation3 + $0x70] sm:$0xff]
    %v95 = vld [vmem:[#allocation3 + $0x78] sm:$0xff]
    %v96 = vld [vmem:[#allocation6] sm:$0xff]
    %v97 = vld [vmem:[#allocation6 + $0x8] sm:$0xff]
    %v98 = vld [vmem:[#allocation6 + $0x10] sm:$0xff]
    %v99 = vld [vmem:[#allocation6 + $0x18] sm:$0xff]
    %v100 = vld [vmem:[#allocation6 + $0x20] sm:$0xff]
    %v101 = vld [vmem:[#allocation6 + $0x28] sm:$0xff]
    %v102 = vld [vmem:[#allocation6 + $0x30] sm:$0xff]
    %v103 = vld [vmem:[#allocation6 + $0x38] sm:$0xff]
    %v104 = vld [vmem:[#allocation6 + $0x40] sm:$0xff]
    %v105 = vld [vmem:[#allocation6 + $0x48] sm:$0xff]
    %v106 = vld [vmem:[#allocation6 + $0x50] sm:$0xff]
    %v107 = vld [vmem:[#allocation6 + $0x58] sm:$0xff]
    %v108 = vld [vmem:[#allocation6 + $0x60] sm:$0xff]
    %v109 = vld [vmem:[#allocation6 + $0x68] sm:$0xff]
    %v110 = vld [vmem:[#allocation6 + $0x70] sm:$0xff]
    %v111 = vld [vmem:[#allocation6 + $0x78] sm:$0xff]
    %112 = vmatpush.msra.mxu0 %v111
    %113 = vmatpush.msra.mxu0 %v110
    %114 = vmatpush.msra.mxu0 %v109
    %115 = vmatpush.msra.mxu0 %v108
    %116 = vmatpush.msra.mxu0 %v107
    %117 = vmatpush.msra.mxu0 %v106
    %118 = vmatpush.msra.mxu0 %v105
    %119 = vmatpush.msra.mxu0 %v104
    %120 = vmatpush.msra.mxu0 %v103
    %121 = vmatpush.msra.mxu0 %v102
    %122 = vmatpush.msra.mxu0 %v101
    %123 = vmatpush.msra.mxu0 %v100
    %124 = vmatpush.msra.mxu0 %v99
    %125 = vmatpush.msra.mxu0 %v98
    %126 = vmatpush.msra.mxu0 %v97
    %127 = vmatpush.msra.mxu0 %v96
    %128 = vmatmul.f32.gmra.mxu0 %v80
    %v129 = vpop.f32.mrf.mxu0
    %v130 = vadd.f32 0.0, %v129
    %131 = vmatmul.f32.gmra.mxu0 %v81
    %v132 = vpop.f32.mrf.mxu0
    %v133 = vadd.f32 0.0, %v132
    %134 = vmatmul.f32.gmra.mxu0 %v82
    %v135 = vpop.f32.mrf.mxu0
    %v136 = vadd.f32 0.0, %v135
    %137 = vmatmul.f32.gmra.mxu0 %v83
    %v138 = vpop.f32.mrf.mxu0
    %v139 = vadd.f32 0.0, %v138
    %140 = vmatmul.f32.gmra.mxu0 %v84
    %v141 = vpop.f32.mrf.mxu0
    %v142 = vadd.f32 0.0, %v141
    %143 = vmatmul.f32.gmra.mxu0 %v85
    %v144 = vpop.f32.mrf.mxu0
    %v145 = vadd.f32 0.0, %v144
    %146 = vmatmul.f32.gmra.mxu0 %v86
    %v147 = vpop.f32.mrf.mxu0
    %v148 = vadd.f32 0.0, %v147
    %149 = vmatmul.f32.gmra.mxu0 %v87
    %v150 = vpop.f32.mrf.mxu0
    %v151 = vadd.f32 0.0, %v150
    %152 = vmatmul.f32.gmra.mxu0 %v88
    %v153 = vpop.f32.mrf.mxu0
    %v154 = vadd.f32 0.0, %v153
    %155 = vmatmul.f32.gmra.mxu0 %v89
    %v156 = vpop.f32.mrf.mxu0
    %v157 = vadd.f32 0.0, %v156
    %158 = vmatmul.f32.gmra.mxu0 %v90
    %v159 = vpop.f32.mrf.mxu0
    %v160 = vadd.f32 0.0, %v159
    %161 = vmatmul.f32.gmra.mxu0 %v91
    %v162 = vpop.f32.mrf.mxu0
    %v163 = vadd.f32 0.0, %v162
    %164 = vmatmul.f32.gmra.mxu0 %v92
    %v165 = vpop.f32.mrf.mxu0
    %v166 = vadd.f32 0.0, %v165
    %167 = vmatmul.f32.gmra.mxu0 %v93
    %v168 = vpop.f32.mrf.mxu0
    %v169 = vadd.f32 0.0, %v168
    %170 = vmatmul.f32.gmra.mxu0 %v94
    %v171 = vpop.f32.mrf.mxu0
    %v172 = vadd.f32 0.0, %v171
    %173 = vmatmul.f32.gmra.mxu0 %v95
    %v174 = vpop.f32.mrf.mxu0
    %v175 = vadd.f32 0.0, %v174
    %176 = vdwg.mxu0
    %v177 = vadd.f32 %v64, %v130
    %v178 = vadd.f32 %v65, %v133
    %v179 = vadd.f32 %v66, %v136
    %v180 = vadd.f32 %v67, %v139
    %v181 = vadd.f32 %v68, %v142
    %v182 = vadd.f32 %v69, %v145
    %v183 = vadd.f32 %v70, %v148
    %v184 = vadd.f32 %v71, %v151
    %v185 = vadd.f32 %v72, %v154
    %v186 = vadd.f32 %v73, %v157
    %v187 = vadd.f32 %v74, %v160
    %v188 = vadd.f32 %v75, %v163
    %v189 = vadd.f32 %v76, %v166
    %v190 = vadd.f32 %v77, %v169
    %v191 = vadd.f32 %v78, %v172
    %v192 = vadd.f32 %v79, %v175
    %193 = vst [vmem:[#allocation2] sm:$0xff] %v177
    %194 = vst [vmem:[#allocation2 + $0x8] sm:$0xff] %v178
    %195 = vst [vmem:[#allocation2 + $0x10] sm:$0xff] %v179
    %196 = vst [vmem:[#allocation2 + $0x18] sm:$0xff] %v180
    %197 = vst [vmem:[#allocation2 + $0x20] sm:$0xff] %v181
    %198 = vst [vmem:[#allocation2 + $0x28] sm:$0xff] %v182
    %199 = vst [vmem:[#allocation2 + $0x30] sm:$0xff] %v183
    %200 = vst [vmem:[#allocation2 + $0x38] sm:$0xff] %v184
    %201 = vst [vmem:[#allocation2 + $0x40] sm:$0xff] %v185
    %202 = vst [vmem:[#allocation2 + $0x48] sm:$0xff] %v186
    %203 = vst [vmem:[#allocation2 + $0x50] sm:$0xff] %v187
    %204 = vst [vmem:[#allocation2 + $0x58] sm:$0xff] %v188
    %205 = vst [vmem:[#allocation2 + $0x60] sm:$0xff] %v189
    %206 = vst [vmem:[#allocation2 + $0x68] sm:$0xff] %v190
    %207 = vst [vmem:[#allocation2 + $0x70] sm:$0xff] %v191
    %208 = vst [vmem:[#allocation2 + $0x78] sm:$0xff] %v192
    // Predicated region
    $region22: #{tpu_custom_call.1} parent=1 // pred_check
      %p209 = pneg %p44
    $region23: #{tpu_custom_call.1} parent=1 // pred_check_branch
      %211 = sbr.rel (%p209) target = $region25
    $region24: #{tpu_custom_call.1} parent=1 // pred_region
      %v212 = vld [vmem:[#allocation2] sm:$0xff]
      %v213 = vld [vmem:[#allocation2 + $0x8] sm:$0xff]
      %v214 = vld [vmem:[#allocation2 + $0x10] sm:$0xff]
      %v215 = vld [vmem:[#allocation2 + $0x18] sm:$0xff]
      %v216 = vld [vmem:[#allocation2 + $0x20] sm:$0xff]
      %v217 = vld [vmem:[#allocation2 + $0x28] sm:$0xff]
      %v218 = vld [vmem:[#allocation2 + $0x30] sm:$0xff]
      %v219 = vld [vmem:[#allocation2 + $0x38] sm:$0xff]
      %v220 = vld [vmem:[#allocation2 + $0x40] sm:$0xff]
      %v221 = vld [vmem:[#allocation2 + $0x48] sm:$0xff]
      %v222 = vld [vmem:[#allocation2 + $0x50] sm:$0xff]
      %v223 = vld [vmem:[#allocation2 + $0x58] sm:$0xff]
      %v224 = vld [vmem:[#allocation2 + $0x60] sm:$0xff]
      %v225 = vld [vmem:[#allocation2 + $0x68] sm:$0xff]
      %v226 = vld [vmem:[#allocation2 + $0x70] sm:$0xff]
      %v227 = vld [vmem:[#allocation2 + $0x78] sm:$0xff]
      %228 = vst [vmem:[#allocation8] sm:$0xff] %v212
      %229 = vst [vmem:[#allocation8 + $0x8] sm:$0xff] %v213
      %230 = vst [vmem:[#allocation8 + $0x10] sm:$0xff] %v214
      %231 = vst [vmem:[#allocation8 + $0x18] sm:$0xff] %v215
      %232 = vst [vmem:[#allocation8 + $0x20] sm:$0xff] %v216
      %233 = vst [vmem:[#allocation8 + $0x28] sm:$0xff] %v217
      %234 = vst [vmem:[#allocation8 + $0x30] sm:$0xff] %v218
      %235 = vst [vmem:[#allocation8 + $0x38] sm:$0xff] %v219
      %236 = vst [vmem:[#allocation8 + $0x40] sm:$0xff] %v220
      %237 = vst [vmem:[#allocation8 + $0x48] sm:$0xff] %v221
      %238 = vst [vmem:[#allocation8 + $0x50] sm:$0xff] %v222
      %239 = vst [vmem:[#allocation8 + $0x58] sm:$0xff] %v223
      %240 = vst [vmem:[#allocation8 + $0x60] sm:$0xff] %v224
      %241 = vst [vmem:[#allocation8 + $0x68] sm:$0xff] %v225
      %242 = vst [vmem:[#allocation8 + $0x70] sm:$0xff] %v226
      %243 = vst [vmem:[#allocation8 + $0x78] sm:$0xff] %v227
    $region25: #{tpu_custom_call.1} parent=1 // pred_fallthru
      _
    // Predicated region
    $region26: #{tpu_custom_call.1} parent=1 // pred_check
      _
    $region27: #{tpu_custom_call.1} parent=1 // pred_check_branch
      %245 = sbr.rel (0) target = $region29
    $region28: #{tpu_custom_call.1} parent=1 // pred_region
      %247 = vsyncadd [#allocation5], 0
      %s248 = sshll.u32 [#allocation8], 4
      %s249 = int_to_ptr.vmem [resolvable:$true] %s248
      %s250 = sshll.u32 %s2, 4
      %s251 = int_to_ptr.hbm [resolvable:$true] %s250
      %256 = dma.vmem_to_hbm [thread:$0]  %s249, 2048, %s251, [#allocation5], 128, 128, 8
    $region29: #{tpu_custom_call.1} parent=1 // pred_fallthru
      _
    // Predicated region
    $region30: #{tpu_custom_call.1} parent=1 // pred_check
      _
    $region31: #{tpu_custom_call.1} parent=1 // pred_check_branch
      %258 = sbr.rel (0) target = $region33
    $region32: #{tpu_custom_call.1} parent=1 // pred_region
      %260 = dma.done [#allocation5], 2048
    $region33: #{tpu_custom_call.1} parent=1 // pred_fallthru
      _
    %261 = vsyncpa [#allocation4], 1
    %262 = vsyncpa [#allocation7], 1
    %263 = vsyncpa [#allocation5], 1

</llo_original>
